<compile_context>
chip_gen: v7x
topology: tpu7x:2x2x1
jax: 0.10.0
libtpu: 0.0.40
codegen_flags: <defaults>
</compile_context>

<pallas_src>
import functools

import jax
import jax.numpy as jnp
from jax import lax
from jax.experimental import pallas as pl
from jax.experimental.pallas import tpu as pltpu


# ------------------------------ Pallas kernel -------------------------------

def _mha_kernel(q_ref, k_ref, v_ref,
                wq_ref, bq_ref, wk_ref, bk_ref, wv_ref, bv_ref,
                wo_ref, bo_ref,
                *outs_and_scratch, return_weights):
    """Grid = (batch, head). All work for one (b, h) pair is 2-D and VMEM-resident."""
    if return_weights:
        o_ref, w_ref, acc_ref = outs_and_scratch
    else:
        o_ref, acc_ref = outs_and_scratch
        w_ref = None

    h = pl.program_id(1)
    cdt = q_ref.dtype                       # MXU operand dtype (f32 or bf16)

    @pl.when(h == 0)
    def _init():
        acc_ref[...] = jnp.zeros_like(acc_ref)

    q = q_ref[...]                          # (Sq, D)
    k = k_ref[...]                          # (Sk, D)
    v = v_ref[...]                          # (Sk, D)

    # Per-head projections (1/sqrt(Dk) already folded into wq/bq by prepare_params).
    qh = jnp.dot(q, wq_ref[...], preferred_element_type=jnp.float32) + bq_ref[...]  # (Sq, Dk)
    kh = jnp.dot(k, wk_ref[...], preferred_element_type=jnp.float32) + bk_ref[...]  # (Sk, Dk)
    vh = jnp.dot(v, wv_ref[...], preferred_element_type=jnp.float32) + bv_ref[...]  # (Sk, Dv)

    # scores: contract the last axes of Q and K (no explicit K transpose), f32 accumulation.
    scores = lax.dot_general(qh.astype(cdt), kh.astype(cdt),
                             (((1,), (1,)), ((), ())),
                             preferred_element_type=jnp.float32)                    # (Sq, Sk)

    # Numerically-stable softmax along the last axis (f32 everywhere, incl. v5e).
    m = jnp.max(scores, axis=-1, keepdims=True)
    e = jnp.exp(scores - m)
    p = e * pl.reciprocal(jnp.sum(e, axis=-1, keepdims=True), approx=True)

    if return_weights:                       # static flag: no store, no HBM traffic if off
        w_ref[...] = p.astype(w_ref.dtype)
    # TODO(synk): training-mode dropout on p would go here (eval mode = identity).
    # TODO(synk): mask path (scores.masked_fill_) not implemented; mask=None semantics only.

    pv = jnp.dot(p.astype(cdt), vh.astype(cdt),
                 preferred_element_type=jnp.float32)                                # (Sq, Dv)

    # Per-head slice of the output projection, accumulated over heads in VMEM scratch:
    # concat_h(pv_h) @ Wo == sum_h pv_h @ Wo[h]  -> no concat / lane relayout.
    acc_ref[...] += jnp.dot(pv.astype(cdt), wo_ref[...],
                            preferred_element_type=jnp.float32)                     # (Sq, D)

    @pl.when(h == pl.num_programs(1) - 1)
    def _finalize():
        o_ref[...] = (acc_ref[...] + bo_ref[...]).astype(o_ref.dtype)


# --------------------------- parameters & wrapper ----------------------------

def init_params(key, input_dim, num_heads, key_size, value_size, dtype=jnp.float32):
    """Parameter init mirroring the nn.Linear shapes (stored as [in, out])."""
    ks = jax.random.split(key, 8)

    def lin(kw, kb, fan_in, fan_out):
        bound = 1.0 / jnp.sqrt(jnp.float32(fan_in))
        w = jax.random.uniform(kw, (fan_in, fan_out), dtype, -bound, bound)
        b = jax.random.uniform(kb, (fan_out,), dtype, -bound, bound)
        return w, b

    params = {}
    params["wq"], params["bq"] = lin(ks[0], ks[1], input_dim, key_size * num_heads)
    params["wk"], params["bk"] = lin(ks[2], ks[3], input_dim, key_size * num_heads)
    params["wv"], params["bv"] = lin(ks[4], ks[5], input_dim, value_size * num_heads)
    params["wo"], params["bo"] = lin(ks[6], ks[7], value_size * num_heads, input_dim)
    return params


def prepare_params(params, num_heads, key_size, value_size, compute_dtype=None):
    """One-time (init-time) prep: per-head weight layout + 1/sqrt(Dk) folded into wq/bq."""
    D = params["wq"].shape[0]
    H, Dk, Dv = num_heads, key_size, value_size
    scale = float(key_size) ** -0.5

    prepped = {
        "wq": (params["wq"] * scale).reshape(D, H, Dk).transpose(1, 0, 2),   # (H, D, Dk)
        "bq": (params["bq"] * scale).reshape(H, 1, Dk),
        "wk": params["wk"].reshape(D, H, Dk).transpose(1, 0, 2),             # (H, D, Dk)
        "bk": params["bk"].reshape(H, 1, Dk),
        "wv": params["wv"].reshape(D, H, Dv).transpose(1, 0, 2),             # (H, D, Dv)
        "bv": params["bv"].reshape(H, 1, Dv),
        "wo": params["wo"].reshape(H, Dv, D),                                # (H, Dv, D)
        "bo": params["bo"].reshape(1, D),
    }
    if compute_dtype is not None:
        prepped = jax.tree_util.tree_map(lambda a: a.astype(compute_dtype), prepped)
    return prepped


def multi_head_attention_forward(prepped, query, key, value,
                                 num_heads, key_size, value_size, *,
                                 return_weights=True):
    """Equivalent of MultiHeadAttention.forward(query, key, value, mask=None), eval mode."""
    B, Sq, D = query.shape
    Sk = key.shape[1]
    H, Dk, Dv = num_heads, key_size, value_size

    kern = functools.partial(_mha_kernel, return_weights=return_weights)

    out_shape = [jax.ShapeDtypeStruct((B, Sq, D), query.dtype)]
    out_specs = [pl.BlockSpec((None, Sq, D), lambda b, h: (b, 0, 0))]
    if return_weights:
        out_shape.append(jax.ShapeDtypeStruct((B, H, Sq, Sk), jnp.float32))
        out_specs.append(pl.BlockSpec((None, None, Sq, Sk), lambda b, h: (b, h, 0, 0)))

    results = pl.pallas_call(
        kern,
        out_shape=tuple(out_shape),
        grid=(B, H),
        in_specs=[
            pl.BlockSpec((None, Sq, D), lambda b, h: (b, 0, 0)),   # query
            pl.BlockSpec((None, Sk, D), lambda b, h: (b, 0, 0)),   # key
            pl.BlockSpec((None, Sk, D), lambda b, h: (b, 0, 0)),   # value
            pl.BlockSpec((None, D, Dk), lambda b, h: (h, 0, 0)),   # wq (per-head)
            pl.BlockSpec((None, 1, Dk), lambda b, h: (h, 0, 0)),   # bq
            pl.BlockSpec((None, D, Dk), lambda b, h: (h, 0, 0)),   # wk
            pl.BlockSpec((None, 1, Dk), lambda b, h: (h, 0, 0)),   # bk
            pl.BlockSpec((None, D, Dv), lambda b, h: (h, 0, 0)),   # wv
            pl.BlockSpec((None, 1, Dv), lambda b, h: (h, 0, 0)),   # bv
            pl.BlockSpec((None, Dv, D), lambda b, h: (h, 0, 0)),   # wo (per-head)
            pl.BlockSpec((1, D), lambda b, h: (0, 0)),             # bo
        ],
        out_specs=tuple(out_specs),
        scratch_shapes=[pltpu.VMEM((Sq, D), jnp.float32)],          # head-accumulated output
        compiler_params=pltpu.CompilerParams(
            dimension_semantics=("parallel", "arbitrary"),          # batch splits across TCs
            vmem_limit_bytes=32 * 1024 * 1024,                      # explicit (v5e default is 16 MiB)
        ),
    )(query, key, value,
      prepped["wq"], prepped["bq"], prepped["wk"], prepped["bk"],
      prepped["wv"], prepped["bv"], prepped["wo"], prepped["bo"])

    if return_weights:
        out, w = results
        return out, w
    (out,) = results
    return out, None


# ------------------------------- reference ----------------------------------

def reference_forward(params, query, key, value, num_heads, key_size, value_size):
    B, Sq, D = query.shape

    def split_heads(x, size):
        return x.reshape(B, -1, num_heads, size).transpose(0, 2, 1, 3)

    Q = split_heads(query @ params["wq"] + params["bq"], key_size)
    K = split_heads(key @ params["wk"] + params["bk"], key_size)
    V = split_heads(value @ params["wv"] + params["bv"], value_size)

    scores = jnp.einsum("bhqd,bhkd->bhqk", Q, K) / jnp.sqrt(jnp.float32(key_size))
    w = jax.nn.softmax(scores, axis=-1)
    o = jnp.einsum("bhqk,bhkd->bhqd", w, V)
    o = o.transpose(0, 2, 1, 3).reshape(B, Sq, num_heads * value_size)
    return o @ params["wo"] + params["bo"], w


# --------------------------------- main --------------------------------------

if __name__ == "__main__":
    # small, module-consistent shapes
    B, S = 2, 8
    input_dim, num_heads, key_size, value_size = 32, 4, 8, 8
    dropout_rate = 0.1  # identity in eval mode

    root = jax.random.PRNGKey(0)
    kp, kq, kk, kv = jax.random.split(root, 4)

    params = init_params(kp, input_dim, num_heads, key_size, value_size)
    query = jax.random.normal(kq, (B, S, input_dim), jnp.float32)
    key_in = jax.random.normal(kk, (B, S, input_dim), jnp.float32)
    value_in = jax.random.normal(kv, (B, S, input_dim), jnp.float32)

    prepped = prepare_params(params, num_heads, key_size, value_size)

    # f32 path, attention weights returned (full module semantics).
    out, attn_w = multi_head_attention_forward(
        prepped, query, key_in, value_in, num_heads, key_size, value_size,
        return_weights=True)
    out = jax.block_until_ready(out)
    attn_w = jax.block_until_ready(attn_w)

    ref_out, ref_w = reference_forward(
        params, query, key_in, value_in, num_heads, key_size, value_size)

    assert out.shape == (B, S, input_dim)
    assert attn_w.shape == (B, num_heads, S, S)
    # tolerances loosened slightly for pl.reciprocal(approx=True) in the softmax
    assert jnp.allclose(out, ref_out, atol=3e-3, rtol=3e-3)
    assert jnp.allclose(attn_w, ref_w, atol=3e-3, rtol=3e-3)

    # bf16 operands (f32 MXU accumulation) with the attention-weights output dropped.
    prepped_bf16 = prepare_params(params, num_heads, key_size, value_size,
                                  compute_dtype=jnp.bfloat16)
    out_bf16, none_w = multi_head_attention_forward(
        prepped_bf16,
        query.astype(jnp.bfloat16), key_in.astype(jnp.bfloat16),
        value_in.astype(jnp.bfloat16),
        num_heads, key_size, value_size, return_weights=False)
    out_bf16 = jax.block_until_ready(out_bf16)
    assert none_w is None
    assert out_bf16.shape == (B, S, input_dim)
    assert jnp.allclose(out_bf16.astype(jnp.float32), ref_out, atol=5e-2, rtol=5e-2)

    print("KERNEL_OK")
</pallas_src>

<mosaic_0001>
module attributes {stable_mosaic.version = 11 : i64} {
  func.func @_mha_kernel(%arg0: i32, %arg1: i32, %arg2: memref<1x8x32xf32, #tpu.memory_space<vmem>>, %arg3: memref<1x8x32xf32, #tpu.memory_space<vmem>>, %arg4: memref<1x8x32xf32, #tpu.memory_space<vmem>>, %arg5: memref<1x32x8xf32, #tpu.memory_space<vmem>>, %arg6: memref<1x1x8xf32, #tpu.memory_space<vmem>>, %arg7: memref<1x32x8xf32, #tpu.memory_space<vmem>>, %arg8: memref<1x1x8xf32, #tpu.memory_space<vmem>>, %arg9: memref<1x32x8xf32, #tpu.memory_space<vmem>>, %arg10: memref<1x1x8xf32, #tpu.memory_space<vmem>>, %arg11: memref<1x8x32xf32, #tpu.memory_space<vmem>>, %arg12: memref<1x32xf32, #tpu.memory_space<vmem>>, %arg13: memref<1x8x32xf32, #tpu.memory_space<vmem>>, %arg14: memref<1x1x8x8xf32, #tpu.memory_space<vmem>>, %arg15: memref<8x32xf32, #tpu.memory_space<vmem>>) attributes {dimension_semantics = [#tpu.dimension_semantics<parallel>, #tpu.dimension_semantics<arbitrary>], iteration_bounds = array<i64: 2, 4>, scalar_prefetch = 0 : i64, scratch_operands = 1 : i64, tpu.core_type = #tpu.core_type<tc>, window_params = [{transform_indices = @transform_0, window_bounds = array<i64: 1, 8, 32>}, {transform_indices = @transform_1, window_bounds = array<i64: 1, 8, 32>}, {transform_indices = @transform_2, window_bounds = array<i64: 1, 8, 32>}, {transform_indices = @transform_3, window_bounds = array<i64: 1, 32, 8>}, {transform_indices = @transform_4, window_bounds = array<i64: 1, 1, 8>}, {transform_indices = @transform_5, window_bounds = array<i64: 1, 32, 8>}, {transform_indices = @transform_6, window_bounds = array<i64: 1, 1, 8>}, {transform_indices = @transform_7, window_bounds = array<i64: 1, 32, 8>}, {transform_indices = @transform_8, window_bounds = array<i64: 1, 1, 8>}, {transform_indices = @transform_9, window_bounds = array<i64: 1, 8, 32>}, {pipeline_mode = #tpu.pipeline_mode<synchronous>, transform_indices = @transform_10, window_bounds = array<i64: 1, 32>}, {transform_indices = @transform_11, window_bounds = array<i64: 1, 8, 32>}, {transform_indices = @transform_12, window_bounds = array<i64: 1, 1, 8, 8>}]} {
    %c0_i32 = arith.constant 0 : i32
    %0 = arith.cmpi eq, %arg1, %c0_i32 : i32
    %1 = arith.extui %0 : i1 to i32
    %c0_i32_0 = arith.constant 0 : i32
    %2 = arith.cmpi ne, %1, %c0_i32_0 : i32
    scf.if %2 {
      %cst_46 = arith.constant 0.000000e+00 : f32
      %54 = vector.broadcast %cst_46 : f32 to vector<8x32xf32>
      %c0_47 = arith.constant 0 : index
      %c0_48 = arith.constant 0 : index
      %55 = vector.load %arg15[%c0_47, %c0_48] : memref<8x32xf32, #tpu.memory_space<vmem>>, vector<8x32xf32>
      tpu.vector_store %arg15[%c0_47, %c0_48], %54 {strides = array<i32>} : memref<8x32xf32, #tpu.memory_space<vmem>>, vector<8x32xf32>,
    } else {
    }
    %c0 = arith.constant 0 : index
    %c0_1 = arith.constant 0 : index
    %c0_2 = arith.constant 0 : index
    %3 = vector.load %arg2[%c0, %c0_1, %c0_2] : memref<1x8x32xf32, #tpu.memory_space<vmem>>, vector<1x8x32xf32>
    %4 = vector.shape_cast %3 : vector<1x8x32xf32> to vector<8x32xf32>
    %c0_3 = arith.constant 0 : index
    %c0_4 = arith.constant 0 : index
    %c0_5 = arith.constant 0 : index
    %5 = vector.load %arg3[%c0_3, %c0_4, %c0_5] : memref<1x8x32xf32, #tpu.memory_space<vmem>>, vector<1x8x32xf32>
    %6 = vector.shape_cast %5 : vector<1x8x32xf32> to vector<8x32xf32>
    %c0_6 = arith.constant 0 : index
    %c0_7 = arith.constant 0 : index
    %c0_8 = arith.constant 0 : index
    %7 = vector.load %arg4[%c0_6, %c0_7, %c0_8] : memref<1x8x32xf32, #tpu.memory_space<vmem>>, vector<1x8x32xf32>
    %8 = vector.shape_cast %7 : vector<1x8x32xf32> to vector<8x32xf32>
    %c0_9 = arith.constant 0 : index
    %c0_10 = arith.constant 0 : index
    %c0_11 = arith.constant 0 : index
    %9 = vector.load %arg5[%c0_9, %c0_10, %c0_11] : memref<1x32x8xf32, #tpu.memory_space<vmem>>, vector<1x32x8xf32>
    %10 = vector.shape_cast %9 : vector<1x32x8xf32> to vector<32x8xf32>
    %cst = arith.constant dense<0.000000e+00> : vector<8x8xf32>
    %11 = tpu.matmul %4, %10, %cst {dimension_numbers = #tpu.dot_dimension_numbers<[1], [0], [0], [1], [0, 0, 1, 1], [], []>} : vector<8x32xf32>, vector<32x8xf32>, vector<8x8xf32> -> vector<8x8xf32>
    %c0_12 = arith.constant 0 : index
    %c0_13 = arith.constant 0 : index
    %c0_14 = arith.constant 0 : index
    %12 = vector.load %arg6[%c0_12, %c0_13, %c0_14] : memref<1x1x8xf32, #tpu.memory_space<vmem>>, vector<1x1x8xf32>
    %13 = vector.shape_cast %12 : vector<1x1x8xf32> to vector<1x8xf32>
    %14 = vector.broadcast %13 : vector<1x8xf32> to vector<8x8xf32>
    %15 = arith.addf %11, %14 : vector<8x8xf32>
    %c0_15 = arith.constant 0 : index
    %c0_16 = arith.constant 0 : index
    %c0_17 = arith.constant 0 : index
    %16 = vector.load %arg7[%c0_15, %c0_16, %c0_17] : memref<1x32x8xf32, #tpu.memory_space<vmem>>, vector<1x32x8xf32>
    %17 = vector.shape_cast %16 : vector<1x32x8xf32> to vector<32x8xf32>
    %cst_18 = arith.constant dense<0.000000e+00> : vector<8x8xf32>
    %18 = tpu.matmul %6, %17, %cst_18 {dimension_numbers = #tpu.dot_dimension_numbers<[1], [0], [0], [1], [0, 0, 1, 1], [], []>} : vector<8x32xf32>, vector<32x8xf32>, vector<8x8xf32> -> vector<8x8xf32>
    %c0_19 = arith.constant 0 : index
    %c0_20 = arith.constant 0 : index
    %c0_21 = arith.constant 0 : index
    %19 = vector.load %arg8[%c0_19, %c0_20, %c0_21] : memref<1x1x8xf32, #tpu.memory_space<vmem>>, vector<1x1x8xf32>
    %20 = vector.shape_cast %19 : vector<1x1x8xf32> to vector<1x8xf32>
    %21 = vector.broadcast %20 : vector<1x8xf32> to vector<8x8xf32>
    %22 = arith.addf %18, %21 : vector<8x8xf32>
    %c0_22 = arith.constant 0 : index
    %c0_23 = arith.constant 0 : index
    %c0_24 = arith.constant 0 : index
    %23 = vector.load %arg9[%c0_22, %c0_23, %c0_24] : memref<1x32x8xf32, #tpu.memory_space<vmem>>, vector<1x32x8xf32>
    %24 = vector.shape_cast %23 : vector<1x32x8xf32> to vector<32x8xf32>
    %cst_25 = arith.constant dense<0.000000e+00> : vector<8x8xf32>
    %25 = tpu.matmul %8, %24, %cst_25 {dimension_numbers = #tpu.dot_dimension_numbers<[1], [0], [0], [1], [0, 0, 1, 1], [], []>} : vector<8x32xf32>, vector<32x8xf32>, vector<8x8xf32> -> vector<8x8xf32>
    %c0_26 = arith.constant 0 : index
    %c0_27 = arith.constant 0 : index
    %c0_28 = arith.constant 0 : index
    %26 = vector.load %arg10[%c0_26, %c0_27, %c0_28] : memref<1x1x8xf32, #tpu.memory_space<vmem>>, vector<1x1x8xf32>
    %27 = vector.shape_cast %26 : vector<1x1x8xf32> to vector<1x8xf32>
    %28 = vector.broadcast %27 : vector<1x8xf32> to vector<8x8xf32>
    %29 = arith.addf %25, %28 : vector<8x8xf32>
    %cst_29 = arith.constant dense<0.000000e+00> : vector<8x8xf32>
    %30 = tpu.matmul %15, %22, %cst_29 {dimension_numbers = #tpu.dot_dimension_numbers<[1], [1], [0], [0], [0, 0, 1, 0], [], []>} : vector<8x8xf32>, vector<8x8xf32>, vector<8x8xf32> -> vector<8x8xf32>
    %cst_30 = arith.constant dense<0xFF800000> : vector<8xf32>
    %31 = vector.multi_reduction <maximumf>, %30, %cst_30 [1] : vector<8x8xf32> to vector<8xf32>
    %32 = vector.shape_cast %31 : vector<8xf32> to vector<8x1xf32>
    %33 = vector.broadcast %32 : vector<8x1xf32> to vector<8x8xf32>
    %34 = arith.subf %30, %33 : vector<8x8xf32>
    %35 = math.exp %34 : vector<8x8xf32>
    %cst_31 = arith.constant dense<0.000000e+00> : vector<8xf32>
    %36 = vector.multi_reduction <add>, %35, %cst_31 [1] : vector<8x8xf32> to vector<8xf32>
    %37 = vector.shape_cast %36 : vector<8xf32> to vector<8x1xf32>
    %38 = tpu.reciprocal %37 {approx = true} : vector<8x1xf32> -> vector<8x1xf32>
    %39 = vector.broadcast %38 : vector<8x1xf32> to vector<8x8xf32>
    %40 = arith.mulf %35, %39 : vector<8x8xf32>
    %c0_32 = arith.constant 0 : index
    %c0_33 = arith.constant 0 : index
    %c0_34 = arith.constant 0 : index
    %c0_35 = arith.constant 0 : index
    %41 = vector.load %arg14[%c0_32, %c0_33, %c0_34, %c0_35] : memref<1x1x8x8xf32, #tpu.memory_space<vmem>>, vector<1x1x8x8xf32>
    %42 = vector.shape_cast %41 : vector<1x1x8x8xf32> to vector<8x8xf32>
    %43 = vector.shape_cast %40 : vector<8x8xf32> to vector<1x1x8x8xf32>
    tpu.vector_store %arg14[%c0_32, %c0_33, %c0_34, %c0_35], %43 {strides = array<i32>} : memref<1x1x8x8xf32, #tpu.memory_space<vmem>>, vector<1x1x8x8xf32>,
    %cst_36 = arith.constant dense<0.000000e+00> : vector<8x8xf32>
    %44 = tpu.matmul %40, %29, %cst_36 {dimension_numbers = #tpu.dot_dimension_numbers<[1], [0], [0], [1], [0, 0, 1, 1], [], []>} : vector<8x8xf32>, vector<8x8xf32>, vector<8x8xf32> -> vector<8x8xf32>
    %c0_37 = arith.constant 0 : index
    %c0_38 = arith.constant 0 : index
    %45 = vector.load %arg15[%c0_37, %c0_38] : memref<8x32xf32, #tpu.memory_space<vmem>>, vector<8x32xf32>
    %c0_39 = arith.constant 0 : index
    %c0_40 = arith.constant 0 : index
    %c0_41 = arith.constant 0 : index
    %46 = vector.load %arg11[%c0_39, %c0_40, %c0_41] : memref<1x8x32xf32, #tpu.memory_space<vmem>>, vector<1x8x32xf32>
    %47 = vector.shape_cast %46 : vector<1x8x32xf32> to vector<8x32xf32>
    %cst_42 = arith.constant dense<0.000000e+00> : vector<8x32xf32>
    %48 = tpu.matmul %44, %47, %cst_42 {dimension_numbers = #tpu.dot_dimension_numbers<[1], [0], [0], [1], [0, 0, 1, 1], [], []>} : vector<8x8xf32>, vector<8x32xf32>, vector<8x32xf32> -> vector<8x32xf32>
    %49 = arith.addf %45, %48 : vector<8x32xf32>
    %c0_43 = arith.constant 0 : index
    %c0_44 = arith.constant 0 : index
    %50 = vector.load %arg15[%c0_43, %c0_44] : memref<8x32xf32, #tpu.memory_space<vmem>>, vector<8x32xf32>
    tpu.vector_store %arg15[%c0_43, %c0_44], %49 {strides = array<i32>} : memref<8x32xf32, #tpu.memory_space<vmem>>, vector<8x32xf32>,
    %c3_i32 = arith.constant 3 : i32
    %51 = arith.cmpi eq, %arg1, %c3_i32 : i32
    %52 = arith.extui %51 : i1 to i32
    %c0_i32_45 = arith.constant 0 : i32
    %53 = arith.cmpi ne, %52, %c0_i32_45 : i32
    scf.if %53 {
      %c0_46 = arith.constant 0 : index
      %c0_47 = arith.constant 0 : index
      %54 = vector.load %arg15[%c0_46, %c0_47] : memref<8x32xf32, #tpu.memory_space<vmem>>, vector<8x32xf32>
      %c0_48 = arith.constant 0 : index
      %c0_49 = arith.constant 0 : index
      %55 = vector.load %arg12[%c0_48, %c0_49] : memref<1x32xf32, #tpu.memory_space<vmem>>, vector<1x32xf32>
      %56 = vector.broadcast %55 : vector<1x32xf32> to vector<8x32xf32>
      %57 = arith.addf %54, %56 : vector<8x32xf32>
      %c0_50 = arith.constant 0 : index
      %c0_51 = arith.constant 0 : index
      %c0_52 = arith.constant 0 : index
      %58 = vector.load %arg13[%c0_50, %c0_51, %c0_52] : memref<1x8x32xf32, #tpu.memory_space<vmem>>, vector<1x8x32xf32>
      %59 = vector.shape_cast %58 : vector<1x8x32xf32> to vector<8x32xf32>
      %60 = vector.shape_cast %57 : vector<8x32xf32> to vector<1x8x32xf32>
      tpu.vector_store %arg13[%c0_50, %c0_51, %c0_52], %60 {strides = array<i32>} : memref<1x8x32xf32, #tpu.memory_space<vmem>>, vector<1x8x32xf32>,
    } else {
    }
    return
  }
  func.func @transform_0(%arg0: i32, %arg1: i32) -> (i32, i32, i32) {
    %c0_i32 = arith.constant 0 : i32
    %c0_i32_0 = arith.constant 0 : i32
    %c0_i32_1 = arith.constant 0 : i32
    return %arg0, %c0_i32, %c0_i32_0 : i32, i32, i32
  }
  func.func @transform_1(%arg0: i32, %arg1: i32) -> (i32, i32, i32) {
    %c0_i32 = arith.constant 0 : i32
    %c0_i32_0 = arith.constant 0 : i32
    %c0_i32_1 = arith.constant 0 : i32
    return %arg0, %c0_i32, %c0_i32_0 : i32, i32, i32
  }
  func.func @transform_2(%arg0: i32, %arg1: i32) -> (i32, i32, i32) {
    %c0_i32 = arith.constant 0 : i32
    %c0_i32_0 = arith.constant 0 : i32
    %c0_i32_1 = arith.constant 0 : i32
    return %arg0, %c0_i32, %c0_i32_0 : i32, i32, i32
  }
  func.func @transform_3(%arg0: i32, %arg1: i32) -> (i32, i32, i32) {
    %c0_i32 = arith.constant 0 : i32
    %c0_i32_0 = arith.constant 0 : i32
    %c0_i32_1 = arith.constant 0 : i32
    return %arg1, %c0_i32, %c0_i32_0 : i32, i32, i32
  }
  func.func @transform_4(%arg0: i32, %arg1: i32) -> (i32, i32, i32) {
    %c0_i32 = arith.constant 0 : i32
    %c0_i32_0 = arith.constant 0 : i32
    %c0_i32_1 = arith.constant 0 : i32
    return %arg1, %c0_i32, %c0_i32_0 : i32, i32, i32
  }
  func.func @transform_5(%arg0: i32, %arg1: i32) -> (i32, i32, i32) {
    %c0_i32 = arith.constant 0 : i32
    %c0_i32_0 = arith.constant 0 : i32
    %c0_i32_1 = arith.constant 0 : i32
    return %arg1, %c0_i32, %c0_i32_0 : i32, i32, i32
  }
  func.func @transform_6(%arg0: i32, %arg1: i32) -> (i32, i32, i32) {
    %c0_i32 = arith.constant 0 : i32
    %c0_i32_0 = arith.constant 0 : i32
    %c0_i32_1 = arith.constant 0 : i32
    return %arg1, %c0_i32, %c0_i32_0 : i32, i32, i32
  }
  func.func @transform_7(%arg0: i32, %arg1: i32) -> (i32, i32, i32) {
    %c0_i32 = arith.constant 0 : i32
    %c0_i32_0 = arith.constant 0 : i32
    %c0_i32_1 = arith.constant 0 : i32
    return %arg1, %c0_i32, %c0_i32_0 : i32, i32, i32
  }
  func.func @transform_8(%arg0: i32, %arg1: i32) -> (i32, i32, i32) {
    %c0_i32 = arith.constant 0 : i32
    %c0_i32_0 = arith.constant 0 : i32
    %c0_i32_1 = arith.constant 0 : i32
    return %arg1, %c0_i32, %c0_i32_0 : i32, i32, i32
  }
  func.func @transform_9(%arg0: i32, %arg1: i32) -> (i32, i32, i32) {
    %c0_i32 = arith.constant 0 : i32
    %c0_i32_0 = arith.constant 0 : i32
    %c0_i32_1 = arith.constant 0 : i32
    return %arg1, %c0_i32, %c0_i32_0 : i32, i32, i32
  }
  func.func @transform_10(%arg0: i32, %arg1: i32) -> (i32, i32) {
    %c0_i32 = arith.constant 0 : i32
    %c0_i32_0 = arith.constant 0 : i32
    %c0_i32_1 = arith.constant 0 : i32
    return %c0_i32, %c0_i32_0 : i32, i32
  }
  func.func @transform_11(%arg0: i32, %arg1: i32) -> (i32, i32, i32) {
    %c0_i32 = arith.constant 0 : i32
    %c0_i32_0 = arith.constant 0 : i32
    %c0_i32_1 = arith.constant 0 : i32
    return %arg0, %c0_i32, %c0_i32_0 : i32, i32, i32
  }
  func.func @transform_12(%arg0: i32, %arg1: i32) -> (i32, i32, i32, i32) {
    %c0_i32 = arith.constant 0 : i32
    %c0_i32_0 = arith.constant 0 : i32
    %c0_i32_1 = arith.constant 0 : i32
    return %arg0, %arg1, %c0_i32, %c0_i32_0 : i32, i32, i32, i32
  }
}

</mosaic_0001>

<llo_original>
// kernel: tpu_custom_call.1
$region0: #{tpu_custom_call.1}
  #allocation0 [shape = 'u32[]', space=smem, size = 0x4, offset = 0x4, fixed_abs, tag = 'smem constant byte address 0x4 - core index']
  #allocation1 [shape = 'u32[144,128]{1,0:T(1,128)}', space=vmem, size = 0x12000, scoped, tag = 'internal scratch']
  #allocation2 [shape = 'f32[8,32]{1,0:T(8,128)}', space=vmem, size = 0x1000, scoped, tag = 'scratch operand']
  %s0 = inlined_call_operand.vmem [shape: f32[2,8,32], index: 0, kind: input, shape index: {}]
  %s1 = inlined_call_operand.vmem [shape: f32[2,8,32], index: 1, kind: input, shape index: {}]
  %s2 = inlined_call_operand.vmem [shape: f32[2,8,32], index: 2, kind: input, shape index: {}]
  %s3 = inlined_call_operand.vmem [shape: f32[4,32,8], index: 3, kind: input, shape index: {}]
  %s4 = inlined_call_operand.vmem [shape: f32[4,1,8], index: 4, kind: input, shape index: {}]
  %s5 = inlined_call_operand.vmem [shape: f32[4,32,8], index: 5, kind: input, shape index: {}]
  %s6 = inlined_call_operand.vmem [shape: f32[4,1,8], index: 6, kind: input, shape index: {}]
  %s7 = inlined_call_operand.vmem [shape: f32[4,32,8], index: 7, kind: input, shape index: {}]
  %s8 = inlined_call_operand.vmem [shape: f32[4,1,8], index: 8, kind: input, shape index: {}]
  %s9 = inlined_call_operand.vmem [shape: f32[4,8,32], index: 9, kind: input, shape index: {}]
  %s10 = inlined_call_operand.vmem [shape: f32[1,32], index: 10, kind: input, shape index: {}]
  %s11 = inlined_call_operand.hbm [shape: f32[2,8,32], index: 11, kind: output, shape index: {0}]
  %s12 = inlined_call_operand.hbm [shape: f32[2,4,8,8], index: 12, kind: output, shape index: {1}]
  %13 = xla_tuple %s11, %s12
  %s14 = sld [smem:[#allocation0]]
  $region93: #{tpu_custom_call.1} parent=0
    _
  %s16 = ssub.s32 1, %s14
  %s17 = scalar_select 0, %s16, %s14
  $region1: #{tpu_custom_call.1} parent=0
    #allocation3 [shape = 'u8[8192]{0}', space=vmem, size = 0x2000, scoped, tag = 'output window, operand 0']
    #allocation4 [shape = 's32[2]{0}', space=sflag, size = 0x8, scoped, tag = 'scoped memory for tpu_custom_call.1']
    #allocation5 [shape = 'u8[8192]{0}', space=vmem, size = 0x2000, scoped, tag = 'output window, operand 1']
    #allocation6 [shape = 's32[2]{0}', space=sflag, size = 0x8, scoped, tag = 'scoped memory for tpu_custom_call.1']
    %18 = vsyncpa [#allocation4], 0
    %s19 = scalar_lea.sflag [#allocation4], 1
    %20 = vsyncpa %s19, 0
    %21 = vsyncpa [#allocation6], 0
    %s22 = scalar_lea.sflag [#allocation6], 1
    %23 = vsyncpa %s22, 0
    loop: start=0, step=1, limit=10
    $region2: #{tpu_custom_call.1} parent=1 // loop_pre_header
      _
    $region3: #{tpu_custom_call.1} parent=1 // loop_header
      %s25 = sphi 0, %s29
      %p26 = scmp.ge.s32.totalorder %s25, 10
      %s32 = sphi 0, %s44
      %s33 = sphi 0, %s40
      %s34 = sphi 0, %s32
      %s35 = sphi 0, %s33
      %s36 = sphi 0, %s34
      %s37 = sphi 0, %s35
      %s47 = sphi 0, %s49
      %s50 = sphi 0, %s47
      %s51 = sphi 0, %s50
      %s67 = sphi 0, %s51
      %s73 = sphi 0, %s75
      %s76 = sphi 0, %s73
      %s77 = sphi 0, %s76
      %s93 = sphi 0, %s77
      %s99 = sphi 0, %s101
      %s102 = sphi 0, %s99
      %s103 = sphi 0, %s102
      %s119 = sphi 0, %s103
      %s125 = sphi 0, %s127
      %s128 = sphi 0, %s125
      %s129 = sphi 0, %s128
      %s145 = sphi 0, %s129
      %s151 = sphi 0, %s153
      %s154 = sphi 0, %s151
      %s155 = sphi 0, %s154
      %s171 = sphi 0, %s155
      %s177 = sphi 0, %s179
      %s180 = sphi 0, %s177
      %s181 = sphi 0, %s180
      %s197 = sphi 0, %s181
      %s203 = sphi 0, %s205
      %s206 = sphi 0, %s203
      %s207 = sphi 0, %s206
      %s223 = sphi 0, %s207
      %s229 = sphi 0, %s231
      %s232 = sphi 0, %s229
      %s233 = sphi 0, %s232
      %s249 = sphi 0, %s233
      %s255 = sphi 0, %s257
      %s258 = sphi 0, %s255
      %s259 = sphi 0, %s258
      %s275 = sphi 0, %s259
      %s281 = sphi 0, %s283
      %s284 = sphi 0, %s281
      %s285 = sphi 0, %s284
      %s301 = sphi 0, %s285
      %s305 = sphi 0, %s305
      %s307 = sphi 0, %s305
      %s308 = sphi 0, %s307
      %s322 = sphi 0, %s308
      %s328 = sphi 0, %s330
      %s331 = sphi 0, %s328
      %s332 = sphi 0, %s331
      %s348 = sphi 0, %s332
      %s356 = sphi 0, %s358
      %s359 = sphi 0, %s356
      %s360 = sphi 0, %s359
      %s376 = sphi 0, %s360
    $region4: #{tpu_custom_call.1} parent=1 // loop_header_branch
      %28 = sbr.rel (%p26) target = $region8
    $region5: #{tpu_custom_call.1} parent=1 // loop_body
      %s30 = ssub.s32 %s25, 1
      %s31 = ssub.s32 %s25, 2
      %s38 = sadd.s32 1, %s33
      %p39 = scmp.ge.s32.totalorder %s38, 4
      %s40 = scalar_select %p39, 0, %s38
      %s41 = sadd.s32 1, %s32
      %s42 = scalar_select %p39, %s41, %s32
      %p43 = scmp.ge.s32.totalorder %s42, 2
      %s44 = scalar_select %p43, 0, %s42
      %s45 = ssub.s32 %s32, %s44
      %p46 = scmp.eq.s32.totalorder %s45, 0
      %s48 = sadd.s32 %s47, 1
      %s49 = scalar_select %p46, %s47, %s48
      %p52 = pneg %p46
      %p53 = scmp.eq.s32.totalorder %s25, 7
      %p54 = por %p52, %p53
      %p55 = scmp.ne.s32.totalorder %s47, %s50
      %p56 = scmp.eq.s32.totalorder %s25, 0
      %p57 = por %p55, %p56
      %p58 = scmp.ne.s32.totalorder %s47, %s50
      %p59 = scmp.eq.s32.totalorder %s30, 7
      %p60 = por %p58, %p59
      %p61 = scmp.ne.s32.totalorder %s50, %s51
      %p62 = scmp.eq.s32.totalorder %s30, 0
      %p63 = por %p61, %p62
      %p64 = scmp.ne.s32.totalorder %s50, %s51
      %p65 = scmp.eq.s32.totalorder %s31, 7
      %p66 = por %p64, %p65
      %p68 = scmp.ne.s32.totalorder %s51, %s67
      %p69 = scmp.eq.s32.totalorder %s31, 0
      %p70 = por %p68, %p69
      %s71 = ssub.s32 %s32, %s44
      %p72 = scmp.eq.s32.totalorder %s71, 0
      %s74 = sadd.s32 %s73, 1
      %s75 = scalar_select %p72, %s73, %s74
      %p78 = pneg %p72
      %p79 = scmp.eq.s32.totalorder %s25, 7
      %p80 = por %p78, %p79
      %p81 = scmp.ne.s32.totalorder %s73, %s76
      %p82 = scmp.eq.s32.totalorder %s25, 0
      %p83 = por %p81, %p82
      %p84 = scmp.ne.s32.totalorder %s73, %s76
      %p85 = scmp.eq.s32.totalorder %s30, 7
      %p86 = por %p84, %p85
      %p87 = scmp.ne.s32.totalorder %s76, %s77
      %p88 = scmp.eq.s32.totalorder %s30, 0
      %p89 = por %p87, %p88
      %p90 = scmp.ne.s32.totalorder %s76, %s77
      %p91 = scmp.eq.s32.totalorder %s31, 7
      %p92 = por %p90, %p91
      %p94 = scmp.ne.s32.totalorder %s77, %s93
      %p95 = scmp.eq.s32.totalorder %s31, 0
      %p96 = por %p94, %p95
      %s97 = ssub.s32 %s32, %s44
      %p98 = scmp.eq.s32.totalorder %s97, 0
      %s100 = sadd.s32 %s99, 1
      %s101 = scalar_select %p98, %s99, %s100
      %p104 = pneg %p98
      %p105 = scmp.eq.s32.totalorder %s25, 7
      %p106 = por %p104, %p105
      %p107 = scmp.ne.s32.totalorder %s99, %s102
      %p108 = scmp.eq.s32.totalorder %s25, 0
      %p109 = por %p107, %p108
      %p110 = scmp.ne.s32.totalorder %s99, %s102
      %p111 = scmp.eq.s32.totalorder %s30, 7
      %p112 = por %p110, %p111
      %p113 = scmp.ne.s32.totalorder %s102, %s103
      %p114 = scmp.eq.s32.totalorder %s30, 0
      %p115 = por %p113, %p114
      %p116 = scmp.ne.s32.totalorder %s102, %s103
      %p117 = scmp.eq.s32.totalorder %s31, 7
      %p118 = por %p116, %p117
      %p120 = scmp.ne.s32.totalorder %s103, %s119
      %p121 = scmp.eq.s32.totalorder %s31, 0
      %p122 = por %p120, %p121
      %s123 = ssub.s32 %s33, %s40
      %p124 = scmp.eq.s32.totalorder %s123, 0
      %s126 = sadd.s32 %s125, 1
      %s127 = scalar_select %p124, %s125, %s126
      %p130 = pneg %p124
      %p131 = scmp.eq.s32.totalorder %s25, 7
      %p132 = por %p130, %p131
      %p133 = scmp.ne.s32.totalorder %s125, %s128
      %p134 = scmp.eq.s32.totalorder %s25, 0
      %p135 = por %p133, %p134
      %p136 = scmp.ne.s32.totalorder %s125, %s128
      %p137 = scmp.eq.s32.totalorder %s30, 7
      %p138 = por %p136, %p137
      %p139 = scmp.ne.s32.totalorder %s128, %s129
      %p140 = scmp.eq.s32.totalorder %s30, 0
      %p141 = por %p139, %p140
      %p142 = scmp.ne.s32.totalorder %s128, %s129
      %p143 = scmp.eq.s32.totalorder %s31, 7
      %p144 = por %p142, %p143
      %p146 = scmp.ne.s32.totalorder %s129, %s145
      %p147 = scmp.eq.s32.totalorder %s31, 0
      %p148 = por %p146, %p147
      %s149 = ssub.s32 %s33, %s40
      %p150 = scmp.eq.s32.totalorder %s149, 0
      %s152 = sadd.s32 %s151, 1
      %s153 = scalar_select %p150, %s151, %s152
      %p156 = pneg %p150
      %p157 = scmp.eq.s32.totalorder %s25, 7
      %p158 = por %p156, %p157
      %p159 = scmp.ne.s32.totalorder %s151, %s154
      %p160 = scmp.eq.s32.totalorder %s25, 0
      %p161 = por %p159, %p160
      %p162 = scmp.ne.s32.totalorder %s151, %s154
      %p163 = scmp.eq.s32.totalorder %s30, 7
      %p164 = por %p162, %p163
      %p165 = scmp.ne.s32.totalorder %s154, %s155
      %p166 = scmp.eq.s32.totalorder %s30, 0
      %p167 = por %p165, %p166
      %p168 = scmp.ne.s32.totalorder %s154, %s155
      %p169 = scmp.eq.s32.totalorder %s31, 7
      %p170 = por %p168, %p169
      %p172 = scmp.ne.s32.totalorder %s155, %s171
      %p173 = scmp.eq.s32.totalorder %s31, 0
      %p174 = por %p172, %p173
      %s175 = ssub.s32 %s33, %s40
      %p176 = scmp.eq.s32.totalorder %s175, 0
      %s178 = sadd.s32 %s177, 1
      %s179 = scalar_select %p176, %s177, %s178
      %p182 = pneg %p176
      %p183 = scmp.eq.s32.totalorder %s25, 7
      %p184 = por %p182, %p183
      %p185 = scmp.ne.s32.totalorder %s177, %s180
      %p186 = scmp.eq.s32.totalorder %s25, 0
      %p187 = por %p185, %p186
      %p188 = scmp.ne.s32.totalorder %s177, %s180
      %p189 = scmp.eq.s32.totalorder %s30, 7
      %p190 = por %p188, %p189
      %p191 = scmp.ne.s32.totalorder %s180, %s181
      %p192 = scmp.eq.s32.totalorder %s30, 0
      %p193 = por %p191, %p192
      %p194 = scmp.ne.s32.totalorder %s180, %s181
      %p195 = scmp.eq.s32.totalorder %s31, 7
      %p196 = por %p194, %p195
      %p198 = scmp.ne.s32.totalorder %s181, %s197
      %p199 = scmp.eq.s32.totalorder %s31, 0
      %p200 = por %p198, %p199
      %s201 = ssub.s32 %s33, %s40
      %p202 = scmp.eq.s32.totalorder %s201, 0
      %s204 = sadd.s32 %s203, 1
      %s205 = scalar_select %p202, %s203, %s204
      %p208 = pneg %p202
      %p209 = scmp.eq.s32.totalorder %s25, 7
      %p210 = por %p208, %p209
      %p211 = scmp.ne.s32.totalorder %s203, %s206
      %p212 = scmp.eq.s32.totalorder %s25, 0
      %p213 = por %p211, %p212
      %p214 = scmp.ne.s32.totalorder %s203, %s206
      %p215 = scmp.eq.s32.totalorder %s30, 7
      %p216 = por %p214, %p215
      %p217 = scmp.ne.s32.totalorder %s206, %s207
      %p218 = scmp.eq.s32.totalorder %s30, 0
      %p219 = por %p217, %p218
      %p220 = scmp.ne.s32.totalorder %s206, %s207
      %p221 = scmp.eq.s32.totalorder %s31, 7
      %p222 = por %p220, %p221
      %p224 = scmp.ne.s32.totalorder %s207, %s223
      %p225 = scmp.eq.s32.totalorder %s31, 0
      %p226 = por %p224, %p225
      %s227 = ssub.s32 %s33, %s40
      %p228 = scmp.eq.s32.totalorder %s227, 0
      %s230 = sadd.s32 %s229, 1
      %s231 = scalar_select %p228, %s229, %s230
      %p234 = pneg %p228
      %p235 = scmp.eq.s32.totalorder %s25, 7
      %p236 = por %p234, %p235
      %p237 = scmp.ne.s32.totalorder %s229, %s232
      %p238 = scmp.eq.s32.totalorder %s25, 0
      %p239 = por %p237, %p238
      %p240 = scmp.ne.s32.totalorder %s229, %s232
      %p241 = scmp.eq.s32.totalorder %s30, 7
      %p242 = por %p240, %p241
      %p243 = scmp.ne.s32.totalorder %s232, %s233
      %p244 = scmp.eq.s32.totalorder %s30, 0
      %p245 = por %p243, %p244
      %p246 = scmp.ne.s32.totalorder %s232, %s233
      %p247 = scmp.eq.s32.totalorder %s31, 7
      %p248 = por %p246, %p247
      %p250 = scmp.ne.s32.totalorder %s233, %s249
      %p251 = scmp.eq.s32.totalorder %s31, 0
      %p252 = por %p250, %p251
      %s253 = ssub.s32 %s33, %s40
      %p254 = scmp.eq.s32.totalorder %s253, 0
      %s256 = sadd.s32 %s255, 1
      %s257 = scalar_select %p254, %s255, %s256
      %p260 = pneg %p254
      %p261 = scmp.eq.s32.totalorder %s25, 7
      %p262 = por %p260, %p261
      %p263 = scmp.ne.s32.totalorder %s255, %s258
      %p264 = scmp.eq.s32.totalorder %s25, 0
      %p265 = por %p263, %p264
      %p266 = scmp.ne.s32.totalorder %s255, %s258
      %p267 = scmp.eq.s32.totalorder %s30, 7
      %p268 = por %p266, %p267
      %p269 = scmp.ne.s32.totalorder %s258, %s259
      %p270 = scmp.eq.s32.totalorder %s30, 0
      %p271 = por %p269, %p270
      %p272 = scmp.ne.s32.totalorder %s258, %s259
      %p273 = scmp.eq.s32.totalorder %s31, 7
      %p274 = por %p272, %p273
      %p276 = scmp.ne.s32.totalorder %s259, %s275
      %p277 = scmp.eq.s32.totalorder %s31, 0
      %p278 = por %p276, %p277
      %s279 = ssub.s32 %s33, %s40
      %p280 = scmp.eq.s32.totalorder %s279, 0
      %s282 = sadd.s32 %s281, 1
      %s283 = scalar_select %p280, %s281, %s282
      %p286 = pneg %p280
      %p287 = scmp.eq.s32.totalorder %s25, 7
      %p288 = por %p286, %p287
      %p289 = scmp.ne.s32.totalorder %s281, %s284
      %p290 = scmp.eq.s32.totalorder %s25, 0
      %p291 = por %p289, %p290
      %p292 = scmp.ne.s32.totalorder %s281, %s284
      %p293 = scmp.eq.s32.totalorder %s30, 7
      %p294 = por %p292, %p293
      %p295 = scmp.ne.s32.totalorder %s284, %s285
      %p296 = scmp.eq.s32.totalorder %s30, 0
      %p297 = por %p295, %p296
      %p298 = scmp.ne.s32.totalorder %s284, %s285
      %p299 = scmp.eq.s32.totalorder %s31, 7
      %p300 = por %p298, %p299
      %p302 = scmp.ne.s32.totalorder %s285, %s301
      %p303 = scmp.eq.s32.totalorder %s31, 0
      %p304 = por %p302, %p303
      %s306 = sadd.s32 %s305, 1
      %p309 = scmp.eq.s32.totalorder %s25, 7
      %p310 = scmp.ne.s32.totalorder %s305, %s307
      %p311 = scmp.eq.s32.totalorder %s25, 0
      %p312 = por %p310, %p311
      %p313 = scmp.ne.s32.totalorder %s305, %s307
      %p314 = scmp.eq.s32.totalorder %s30, 7
      %p315 = por %p313, %p314
      %p316 = scmp.ne.s32.totalorder %s307, %s308
      %p317 = scmp.eq.s32.totalorder %s30, 0
      %p318 = por %p316, %p317
      %p319 = scmp.ne.s32.totalorder %s307, %s308
      %p320 = scmp.eq.s32.totalorder %s31, 7
      %p321 = por %p319, %p320
      %p323 = scmp.ne.s32.totalorder %s308, %s322
      %p324 = scmp.eq.s32.totalorder %s31, 0
      %p325 = por %p323, %p324
      %s326 = ssub.s32 %s32, %s44
      %p327 = scmp.eq.s32.totalorder %s326, 0
      %s329 = sadd.s32 %s328, 1
      %s330 = scalar_select %p327, %s328, %s329
      %p333 = pneg %p327
      %p334 = scmp.eq.s32.totalorder %s25, 7
      %p335 = por %p333, %p334
      %p336 = scmp.ne.s32.totalorder %s328, %s331
      %p337 = scmp.eq.s32.totalorder %s25, 0
      %p338 = por %p336, %p337
      %p339 = scmp.ne.s32.totalorder %s328, %s331
      %p340 = scmp.eq.s32.totalorder %s30, 7
      %p341 = por %p339, %p340
      %p342 = scmp.ne.s32.totalorder %s331, %s332
      %p343 = scmp.eq.s32.totalorder %s30, 0
      %p344 = por %p342, %p343
      %p345 = scmp.ne.s32.totalorder %s331, %s332
      %p346 = scmp.eq.s32.totalorder %s31, 7
      %p347 = por %p345, %p346
      %p349 = scmp.ne.s32.totalorder %s332, %s348
      %p350 = scmp.eq.s32.totalorder %s31, 0
      %p351 = por %p349, %p350
      %s352 = ssub.s32 %s32, %s44
      %s353 = ssub.s32 %s33, %s40
      %s354 = sor.u32 %s352, %s353
      %p355 = scmp.eq.s32.totalorder %s354, 0
      %s357 = sadd.s32 %s356, 1
      %s358 = scalar_select %p355, %s356, %s357
      %p361 = pneg %p355
      %p362 = scmp.eq.s32.totalorder %s25, 7
      %p363 = por %p361, %p362
      %p364 = scmp.ne.s32.totalorder %s356, %s359
      %p365 = scmp.eq.s32.totalorder %s25, 0
      %p366 = por %p364, %p365
      %p367 = scmp.ne.s32.totalorder %s356, %s359
      %p368 = scmp.eq.s32.totalorder %s30, 7
      %p369 = por %p367, %p368
      %p370 = scmp.ne.s32.totalorder %s359, %s360
      %p371 = scmp.eq.s32.totalorder %s30, 0
      %p372 = por %p370, %p371
      %p373 = scmp.ne.s32.totalorder %s359, %s360
      %p374 = scmp.eq.s32.totalorder %s31, 7
      %p375 = por %p373, %p374
      %p377 = scmp.ne.s32.totalorder %s360, %s376
      %p378 = scmp.eq.s32.totalorder %s31, 0
      %p379 = por %p377, %p378
      %p380 = scmp.le.s32.totalorder 1, %s25
      %p381 = scmp.lt.s32.totalorder %s25, 9
      %p382 = pnand %p380, %p381
      %p383 = pneg %p382
      // Predicated region
      $region9: #{tpu_custom_call.1} parent=5 // pred_check
        _
      $region10: #{tpu_custom_call.1} parent=5 // pred_check_branch
        %385 = sbr.rel (%p382) target = $region12
      $region11: #{tpu_custom_call.1} parent=5 // pred_region
        %s386 = ssub.s32 %s25, 1
        // Predicated region
        $region13: #{tpu_custom_call.1} parent=11 // pred_check
          %p387 = pneg %p318
        $region14: #{tpu_custom_call.1} parent=11 // pred_check_branch
          %389 = sbr.rel (%p387) target = $region16
        $region15: #{tpu_custom_call.1} parent=11 // pred_region
          _
        $region16: #{tpu_custom_call.1} parent=11 // pred_fallthru
          _
      $region12: #{tpu_custom_call.1} parent=5 // pred_fallthru
        _
      %p390 = scmp.lt.s32.totalorder %s25, 8
      // Predicated region
      $region17: #{tpu_custom_call.1} parent=5 // pred_check
        %p391 = pneg %p390
      $region18: #{tpu_custom_call.1} parent=5 // pred_check_branch
        %393 = sbr.rel (%p391) target = $region20
      $region19: #{tpu_custom_call.1} parent=5 // pred_region
        // Predicated region
        $region21: #{tpu_custom_call.1} parent=19 // pred_check
          %p394 = pneg %p57
        $region22: #{tpu_custom_call.1} parent=19 // pred_check_branch
          %396 = sbr.rel (%p394) target = $region24
        $region23: #{tpu_custom_call.1} parent=19 // pred_region
          %p397 = scmp.lt.s32.totalorder %s32, 1
          %s398 = scalar_select %p397, %s32, 1
          %s399 = smul.addr %s398, 8
          %s400 = scalar_lea.vmem %s0, %s399
        $region24: #{tpu_custom_call.1} parent=19 // pred_fallthru
          _
        // Predicated region
        $region25: #{tpu_custom_call.1} parent=19 // pred_check
          %p401 = pneg %p83
        $region26: #{tpu_custom_call.1} parent=19 // pred_check_branch
          %403 = sbr.rel (%p401) target = $region28
        $region27: #{tpu_custom_call.1} parent=19 // pred_region
          %p404 = scmp.lt.s32.totalorder %s32, 1
          %s405 = scalar_select %p404, %s32, 1
          %s406 = smul.addr %s405, 8
          %s407 = scalar_lea.vmem %s1, %s406
        $region28: #{tpu_custom_call.1} parent=19 // pred_fallthru
          _
        // Predicated region
        $region29: #{tpu_custom_call.1} parent=19 // pred_check
          %p408 = pneg %p109
        $region30: #{tpu_custom_call.1} parent=19 // pred_check_branch
          %410 = sbr.rel (%p408) target = $region32
        $region31: #{tpu_custom_call.1} parent=19 // pred_region
          %p411 = scmp.lt.s32.totalorder %s32, 1
          %s412 = scalar_select %p411, %s32, 1
          %s413 = smul.addr %s412, 8
          %s414 = scalar_lea.vmem %s2, %s413
        $region32: #{tpu_custom_call.1} parent=19 // pred_fallthru
          _
        // Predicated region
        $region33: #{tpu_custom_call.1} parent=19 // pred_check
          %p415 = pneg %p135
        $region34: #{tpu_custom_call.1} parent=19 // pred_check_branch
          %417 = sbr.rel (%p415) target = $region36
        $region35: #{tpu_custom_call.1} parent=19 // pred_region
          %p418 = scmp.lt.s32.totalorder %s33, 3
          %s419 = scalar_select %p418, %s33, 3
          %s420 = smul.addr %s419, 4
          %s421 = smul.addr %s420, 8
          %s422 = scalar_lea.vmem %s3, %s421
        $region36: #{tpu_custom_call.1} parent=19 // pred_fallthru
          _
        // Predicated region
        $region37: #{tpu_custom_call.1} parent=19 // pred_check
          %p423 = pneg %p161
        $region38: #{tpu_custom_call.1} parent=19 // pred_check_branch
          %425 = sbr.rel (%p423) target = $region40
        $region39: #{tpu_custom_call.1} parent=19 // pred_region
          %p426 = scmp.lt.s32.totalorder %s33, 3
          %s427 = scalar_select %p426, %s33, 3
          %s428 = scalar_lea.vmem %s4, %s427
        $region40: #{tpu_custom_call.1} parent=19 // pred_fallthru
          _
        // Predicated region
        $region41: #{tpu_custom_call.1} parent=19 // pred_check
          %p429 = pneg %p187
        $region42: #{tpu_custom_call.1} parent=19 // pred_check_branch
          %431 = sbr.rel (%p429) target = $region44
        $region43: #{tpu_custom_call.1} parent=19 // pred_region
          %p432 = scmp.lt.s32.totalorder %s33, 3
          %s433 = scalar_select %p432, %s33, 3
          %s434 = smul.addr %s433, 4
          %s435 = smul.addr %s434, 8
          %s436 = scalar_lea.vmem %s5, %s435
        $region44: #{tpu_custom_call.1} parent=19 // pred_fallthru
          _
        // Predicated region
        $region45: #{tpu_custom_call.1} parent=19 // pred_check
          %p437 = pneg %p213
        $region46: #{tpu_custom_call.1} parent=19 // pred_check_branch
          %439 = sbr.rel (%p437) target = $region48
        $region47: #{tpu_custom_call.1} parent=19 // pred_region
          %p440 = scmp.lt.s32.totalorder %s33, 3
          %s441 = scalar_select %p440, %s33, 3
          %s442 = scalar_lea.vmem %s6, %s441
        $region48: #{tpu_custom_call.1} parent=19 // pred_fallthru
          _
        // Predicated region
        $region49: #{tpu_custom_call.1} parent=19 // pred_check
          %p443 = pneg %p239
        $region50: #{tpu_custom_call.1} parent=19 // pred_check_branch
          %445 = sbr.rel (%p443) target = $region52
        $region51: #{tpu_custom_call.1} parent=19 // pred_region
          %p446 = scmp.lt.s32.totalorder %s33, 3
          %s447 = scalar_select %p446, %s33, 3
          %s448 = smul.addr %s447, 4
          %s449 = smul.addr %s448, 8
          %s450 = scalar_lea.vmem %s7, %s449
        $region52: #{tpu_custom_call.1} parent=19 // pred_fallthru
          _
        // Predicated region
        $region53: #{tpu_custom_call.1} parent=19 // pred_check
          %p451 = pneg %p265
        $region54: #{tpu_custom_call.1} parent=19 // pred_check_branch
          %453 = sbr.rel (%p451) target = $region56
        $region55: #{tpu_custom_call.1} parent=19 // pred_region
          %p454 = scmp.lt.s32.totalorder %s33, 3
          %s455 = scalar_select %p454, %s33, 3
          %s456 = scalar_lea.vmem %s8, %s455
        $region56: #{tpu_custom_call.1} parent=19 // pred_fallthru
          _
        // Predicated region
        $region57: #{tpu_custom_call.1} parent=19 // pred_check
          %p457 = pneg %p291
        $region58: #{tpu_custom_call.1} parent=19 // pred_check_branch
          %459 = sbr.rel (%p457) target = $region60
        $region59: #{tpu_custom_call.1} parent=19 // pred_region
          %p460 = scmp.lt.s32.totalorder %s33, 3
          %s461 = scalar_select %p460, %s33, 3
          %s462 = smul.addr %s461, 8
          %s463 = scalar_lea.vmem %s9, %s462
        $region60: #{tpu_custom_call.1} parent=19 // pred_fallthru
          _
      $region20: #{tpu_custom_call.1} parent=5 // pred_fallthru
        _
      %p464 = scmp.le.s32.totalorder 1, %s25
      %p465 = scmp.lt.s32.totalorder %s25, 9
      %p466 = pnand %p464, %p465
      %p467 = pneg %p466
      // Predicated region
      $region61: #{tpu_custom_call.1} parent=5 // pred_check
        _
      $region62: #{tpu_custom_call.1} parent=5 // pred_check_branch
        %469 = sbr.rel (%p466) target = $region64
      $region63: #{tpu_custom_call.1} parent=5 // pred_region
        %s470 = ssub.s32 %s25, 1
        %p471 = scmp.lt.s32.totalorder %s34, 1
        %s472 = scalar_select %p471, %s34, 1
        %s473 = smul.addr %s472, 8
        %s474 = scalar_lea.vmem %s0, %s473
        %p475 = pneg %p63
        %p476 = pneg %p60
        %p477 = scmp.lt.s32.totalorder %s34, 1
        %s478 = scalar_select %p477, %s34, 1
        %s479 = smul.addr %s478, 8
        %s480 = scalar_lea.vmem %s1, %s479
        %p481 = pneg %p89
        %p482 = pneg %p86
        %p483 = scmp.lt.s32.totalorder %s34, 1
        %s484 = scalar_select %p483, %s34, 1
        %s485 = smul.addr %s484, 8
        %s486 = scalar_lea.vmem %s2, %s485
        %p487 = pneg %p115
        %p488 = pneg %p112
        %p489 = scmp.lt.s32.totalorder %s35, 3
        %s490 = scalar_select %p489, %s35, 3
        %s491 = smul.addr %s490, 4
        %s492 = smul.addr %s491, 8
        %s493 = scalar_lea.vmem %s3, %s492
        %p494 = pneg %p141
        %p495 = pneg %p138
        %p496 = scmp.lt.s32.totalorder %s35, 3
        %s497 = scalar_select %p496, %s35, 3
        %s498 = scalar_lea.vmem %s4, %s497
        %p499 = pneg %p167
        %p500 = pneg %p164
        %p501 = scmp.lt.s32.totalorder %s35, 3
        %s502 = scalar_select %p501, %s35, 3
        %s503 = smul.addr %s502, 4
        %s504 = smul.addr %s503, 8
        %s505 = scalar_lea.vmem %s5, %s504
        %p506 = pneg %p193
        %p507 = pneg %p190
        %p508 = scmp.lt.s32.totalorder %s35, 3
        %s509 = scalar_select %p508, %s35, 3
        %s510 = scalar_lea.vmem %s6, %s509
        %p511 = pneg %p219
        %p512 = pneg %p216
        %p513 = scmp.lt.s32.totalorder %s35, 3
        %s514 = scalar_select %p513, %s35, 3
        %s515 = smul.addr %s514, 4
        %s516 = smul.addr %s515, 8
        %s517 = scalar_lea.vmem %s7, %s516
        %p518 = pneg %p245
        %p519 = pneg %p242
        %p520 = scmp.lt.s32.totalorder %s35, 3
        %s521 = scalar_select %p520, %s35, 3
        %s522 = scalar_lea.vmem %s8, %s521
        %p523 = pneg %p271
        %p524 = pneg %p268
        %p525 = scmp.lt.s32.totalorder %s35, 3
        %s526 = scalar_select %p525, %s35, 3
        %s527 = smul.addr %s526, 8
        %s528 = scalar_lea.vmem %s9, %s527
        %p529 = pneg %p297
        %p530 = pneg %p294
        %p531 = pneg %p318
        %p532 = pneg %p315
        %p533 = pneg %p344
        %p534 = pneg %p341
        %s535 = sand.u32 %s331, 1
        %s536 = scalar_lea.sflag [#allocation4], %s535
        %s537 = sand.u32 %s331, 1
        %s538 = smul.addr %s537, 8
        %s539 = scalar_lea.vmem [#allocation3], %s538
        %p540 = pneg %p372
        %p541 = pneg %p369
        %s542 = sand.u32 %s359, 1
        %s543 = scalar_lea.sflag [#allocation6], %s542
        %s544 = sand.u32 %s359, 1
        %s545 = smul.addr %s544, 8
        %s546 = scalar_lea.vmem [#allocation5], %s545
        %p547 = scmp.lt.s32.totalorder %s34, 1
        %s548 = scalar_select %p547, %s34, 1
        %s549 = smul.addr %s548, 8
        %s550 = scalar_lea.vmem %s0, %s549
        %p551 = scmp.lt.s32.totalorder %s34, 1
        %s552 = scalar_select %p551, %s34, 1
        %s553 = smul.addr %s552, 8
        %s554 = scalar_lea.vmem %s1, %s553
        %p555 = scmp.lt.s32.totalorder %s34, 1
        %s556 = scalar_select %p555, %s34, 1
        %s557 = smul.addr %s556, 8
        %s558 = scalar_lea.vmem %s2, %s557
        %p559 = scmp.lt.s32.totalorder %s35, 3
        %s560 = scalar_select %p559, %s35, 3
        %s561 = smul.addr %s560, 4
        %s562 = smul.addr %s561, 8
        %s563 = scalar_lea.vmem %s3, %s562
        %p564 = scmp.lt.s32.totalorder %s35, 3
        %s565 = scalar_select %p564, %s35, 3
        %s566 = scalar_lea.vmem %s4, %s565
        %p567 = scmp.lt.s32.totalorder %s35, 3
        %s568 = scalar_select %p567, %s35, 3
        %s569 = smul.addr %s568, 4
        %s570 = smul.addr %s569, 8
        %s571 = scalar_lea.vmem %s5, %s570
        %p572 = scmp.lt.s32.totalorder %s35, 3
        %s573 = scalar_select %p572, %s35, 3
        %s574 = scalar_lea.vmem %s6, %s573
        %p575 = scmp.lt.s32.totalorder %s35, 3
        %s576 = scalar_select %p575, %s35, 3
        %s577 = smul.addr %s576, 4
        %s578 = smul.addr %s577, 8
        %s579 = scalar_lea.vmem %s7, %s578
        %p580 = scmp.lt.s32.totalorder %s35, 3
        %s581 = scalar_select %p580, %s35, 3
        %s582 = scalar_lea.vmem %s8, %s581
        %p583 = scmp.lt.s32.totalorder %s35, 3
        %s584 = scalar_select %p583, %s35, 3
        %s585 = smul.addr %s584, 8
        %s586 = scalar_lea.vmem %s9, %s585
        %p587 = scmp.eq.s32.totalorder %s35, 0
        // Predicated region
        $region65: #{tpu_custom_call.1} parent=63 // pred_check
          %p588 = pneg %p587
        $region66: #{tpu_custom_call.1} parent=63 // pred_check_branch
          %590 = sbr.rel (%p588) target = $region68
        $region67: #{tpu_custom_call.1} parent=63 // pred_region
          %vm591 = vcmask 261120
          %592 = vst.msk [vmem:[#allocation2] sm:$0xff] %vm591, 0.0
        $region68: #{tpu_custom_call.1} parent=63 // pred_fallthru
          _
        %v593 = vld [vmem:[%s550] sm:$0xff]
        %v594 = vld [vmem:[%s554] sm:$0xff]
        %v595 = vld [vmem:[%s558] sm:$0xff]
        %v596 = vld [vmem:[%s563] sm:$0xff]
        %v597 = vld [vmem:[%s563 + $0x8] sm:$0xff]
        %v598 = vld [vmem:[%s563 + $0x10] sm:$0xff]
        %v599 = vld [vmem:[%s563 + $0x18] sm:$0xff]
        %v600 = vld [vmem:[%s566] sm:$0x1]
        %v602 = vlaneseq
        %v603 = vshrl.u32 %v602, 7
        %v604 = vsub.s32 0, %v603
        %v605 = vrot.slane %v600, %v604
        %vm607 = vcmask 261120
        %v609 = vsel %vm607, %v593, 0
        %611 = vmatprep.subr.mxu0 0.0
        %612 = vmatpush1.msra.mxu0 %v596
        %613 = vmatprep.subr.mxu0 0.0
        %614 = vmatpush1.msra.mxu0 %v597
        %615 = vmatprep.subr.mxu0 0.0
        %616 = vmatpush1.msra.mxu0 %v598
        %617 = vmatprep.subr.mxu0 0.0
        %618 = vmatpush1.msra.mxu0 %v599
        %619 = vmatprep.subr.mxu0 0.0
        %620 = vmatpush1.msra.mxu0 0.0
        %621 = vmatprep.subr.mxu0 0.0
        %622 = vmatpush1.msra.mxu0 0.0
        %623 = vmatprep.subr.mxu0 0.0
        %624 = vmatpush1.msra.mxu0 0.0
        %625 = vmatprep.subr.mxu0 0.0
        %626 = vmatpush1.msra.mxu0 0.0
        %627 = vmatprep.subr.mxu0 0.0
        %628 = vmatpush1.msra.mxu0 0.0
        %629 = vmatprep.subr.mxu0 0.0
        %630 = vmatpush1.msra.mxu0 0.0
        %631 = vmatprep.subr.mxu0 0.0
        %632 = vmatpush1.msra.mxu0 0.0
        %633 = vmatprep.subr.mxu0 0.0
        %634 = vmatpush1.msra.mxu0 0.0
        %635 = vmatprep.subr.mxu0 0.0
        %636 = vmatpush1.msra.mxu0 0.0
        %637 = vmatprep.subr.mxu0 0.0
        %638 = vmatpush1.msra.mxu0 0.0
        %639 = vmatprep.subr.mxu0 0.0
        %640 = vmatpush1.msra.mxu0 0.0
        %641 = vmatprep.subr.mxu0 0.0
        %642 = vmatpush1.msra.mxu0 0.0
        %643 = vmatprep.subr.mxu0 0.0
        %644 = vmatpush1.msra.mxu0 0.0
        %645 = vmatprep.subr.mxu0 0.0
        %646 = vmatpush1.msra.mxu0 0.0
        %647 = vmatprep.subr.mxu0 0.0
        %648 = vmatpush1.msra.mxu0 0.0
        %649 = vmatprep.subr.mxu0 0.0
        %650 = vmatpush1.msra.mxu0 0.0
        %651 = vmatprep.subr.mxu0 0.0
        %652 = vmatpush1.msra.mxu0 0.0
        %653 = vmatprep.subr.mxu0 0.0
        %654 = vmatpush1.msra.mxu0 0.0
        %655 = vmatprep.subr.mxu0 0.0
        %656 = vmatpush1.msra.mxu0 0.0
        %657 = vmatprep.subr.mxu0 0.0
        %658 = vmatpush1.msra.mxu0 0.0
        %659 = vmatprep.subr.mxu0 0.0
        %660 = vmatpush1.msra.mxu0 0.0
        %661 = vmatprep.subr.mxu0 0.0
        %662 = vmatpush1.msra.mxu0 0.0
        %663 = vmatprep.subr.mxu0 0.0
        %664 = vmatpush1.msra.mxu0 0.0
        %665 = vmatprep.subr.mxu0 0.0
        %666 = vmatpush1.msra.mxu0 0.0
        %667 = vmatprep.subr.mxu0 0.0
        %668 = vmatpush1.msra.mxu0 0.0
        %669 = vmatprep.subr.mxu0 0.0
        %670 = vmatpush1.msra.mxu0 0.0
        %671 = vmatprep.subr.mxu0 0.0
        %672 = vmatpush1.msra.mxu0 0.0
        %673 = vmatprep.subr.mxu0 0.0
        %674 = vmatpush1.msra.mxu0 0.0
        %675 = vmatprep.mubr.f32.mxu0 0.0
        %676 = vmatmul.mubr.f32.gmra.mrb[0].mxu0 %v609
        %v677 = vpop.f32.mrb[0].mxu0
        %v678 = vadd.f32 %v605, %v677
        %v679 = vpop.f32.mrb[0].mxu0
        %680 = vdwg.mxu0
        %v681 = vld [vmem:[%s571] sm:$0xff]
        %v682 = vld [vmem:[%s571 + $0x8] sm:$0xff]
        %v683 = vld [vmem:[%s571 + $0x10] sm:$0xff]
        %v684 = vld [vmem:[%s571 + $0x18] sm:$0xff]
        %v685 = vld [vmem:[%s574] sm:$0x1]
        %v687 = vlaneseq
        %v688 = vshrl.u32 %v687, 7
        %v689 = vsub.s32 0, %v688
        %v690 = vrot.slane %v685, %v689
        %v693 = vsel %vm607, %v594, 0
        %695 = vmatprep.subr.mxu0 0.0
        %696 = vmatpush1.msra.mxu0 %v681
        %697 = vmatprep.subr.mxu0 0.0
        %698 = vmatpush1.msra.mxu0 %v682
        %699 = vmatprep.subr.mxu0 0.0
        %700 = vmatpush1.msra.mxu0 %v683
        %701 = vmatprep.subr.mxu0 0.0
        %702 = vmatpush1.msra.mxu0 %v684
        %703 = vmatprep.subr.mxu0 0.0
        %704 = vmatpush1.msra.mxu0 0.0
        %705 = vmatprep.subr.mxu0 0.0
        %706 = vmatpush1.msra.mxu0 0.0
        %707 = vmatprep.subr.mxu0 0.0
        %708 = vmatpush1.msra.mxu0 0.0
        %709 = vmatprep.subr.mxu0 0.0
        %710 = vmatpush1.msra.mxu0 0.0
        %711 = vmatprep.subr.mxu0 0.0
        %712 = vmatpush1.msra.mxu0 0.0
        %713 = vmatprep.subr.mxu0 0.0
        %714 = vmatpush1.msra.mxu0 0.0
        %715 = vmatprep.subr.mxu0 0.0
        %716 = vmatpush1.msra.mxu0 0.0
        %717 = vmatprep.subr.mxu0 0.0
        %718 = vmatpush1.msra.mxu0 0.0
        %719 = vmatprep.subr.mxu0 0.0
        %720 = vmatpush1.msra.mxu0 0.0
        %721 = vmatprep.subr.mxu0 0.0
        %722 = vmatpush1.msra.mxu0 0.0
        %723 = vmatprep.subr.mxu0 0.0
        %724 = vmatpush1.msra.mxu0 0.0
        %725 = vmatprep.subr.mxu0 0.0
        %726 = vmatpush1.msra.mxu0 0.0
        %727 = vmatprep.subr.mxu0 0.0
        %728 = vmatpush1.msra.mxu0 0.0
        %729 = vmatprep.subr.mxu0 0.0
        %730 = vmatpush1.msra.mxu0 0.0
        %731 = vmatprep.subr.mxu0 0.0
        %732 = vmatpush1.msra.mxu0 0.0
        %733 = vmatprep.subr.mxu0 0.0
        %734 = vmatpush1.msra.mxu0 0.0
        %735 = vmatprep.subr.mxu0 0.0
        %736 = vmatpush1.msra.mxu0 0.0
        %737 = vmatprep.subr.mxu0 0.0
        %738 = vmatpush1.msra.mxu0 0.0
        %739 = vmatprep.subr.mxu0 0.0
        %740 = vmatpush1.msra.mxu0 0.0
        %741 = vmatprep.subr.mxu0 0.0
        %742 = vmatpush1.msra.mxu0 0.0
        %743 = vmatprep.subr.mxu0 0.0
        %744 = vmatpush1.msra.mxu0 0.0
        %745 = vmatprep.subr.mxu0 0.0
        %746 = vmatpush1.msra.mxu0 0.0
        %747 = vmatprep.subr.mxu0 0.0
        %748 = vmatpush1.msra.mxu0 0.0
        %749 = vmatprep.subr.mxu0 0.0
        %750 = vmatpush1.msra.mxu0 0.0
        %751 = vmatprep.subr.mxu0 0.0
        %752 = vmatpush1.msra.mxu0 0.0
        %753 = vmatprep.subr.mxu0 0.0
        %754 = vmatpush1.msra.mxu0 0.0
        %755 = vmatprep.subr.mxu0 0.0
        %756 = vmatpush1.msra.mxu0 0.0
        %757 = vmatprep.subr.mxu0 0.0
        %758 = vmatpush1.msra.mxu0 0.0
        %759 = vmatprep.mubr.f32.mxu0 0.0
        %760 = vmatmul.mubr.f32.gmra.mrb[0].mxu0 %v693
        %v761 = vpop.f32.mrb[0].mxu0
        %v762 = vadd.f32 %v690, %v761
        %v763 = vpop.f32.mrb[0].mxu0
        %764 = vdwg.mxu0
        %v765 = vld [vmem:[%s579] sm:$0xff]
        %v766 = vld [vmem:[%s579 + $0x8] sm:$0xff]
        %v767 = vld [vmem:[%s579 + $0x10] sm:$0xff]
        %v768 = vld [vmem:[%s579 + $0x18] sm:$0xff]
        %v769 = vld [vmem:[%s582] sm:$0x1]
        %v771 = vlaneseq
        %v772 = vshrl.u32 %v771, 7
        %v773 = vsub.s32 0, %v772
        %v774 = vrot.slane %v769, %v773
        %v777 = vsel %vm607, %v595, 0
        %779 = vmatprep.subr.mxu0 0.0
        %780 = vmatpush1.msra.mxu0 %v765
        %781 = vmatprep.subr.mxu0 0.0
        %782 = vmatpush1.msra.mxu0 %v766
        %783 = vmatprep.subr.mxu0 0.0
        %784 = vmatpush1.msra.mxu0 %v767
        %785 = vmatprep.subr.mxu0 0.0
        %786 = vmatpush1.msra.mxu0 %v768
        %787 = vmatprep.subr.mxu0 0.0
        %788 = vmatpush1.msra.mxu0 0.0
        %789 = vmatprep.subr.mxu0 0.0
        %790 = vmatpush1.msra.mxu0 0.0
        %791 = vmatprep.subr.mxu0 0.0
        %792 = vmatpush1.msra.mxu0 0.0
        %793 = vmatprep.subr.mxu0 0.0
        %794 = vmatpush1.msra.mxu0 0.0
        %795 = vmatprep.subr.mxu0 0.0
        %796 = vmatpush1.msra.mxu0 0.0
        %797 = vmatprep.subr.mxu0 0.0
        %798 = vmatpush1.msra.mxu0 0.0
        %799 = vmatprep.subr.mxu0 0.0
        %800 = vmatpush1.msra.mxu0 0.0
        %801 = vmatprep.subr.mxu0 0.0
        %802 = vmatpush1.msra.mxu0 0.0
        %803 = vmatprep.subr.mxu0 0.0
        %804 = vmatpush1.msra.mxu0 0.0
        %805 = vmatprep.subr.mxu0 0.0
        %806 = vmatpush1.msra.mxu0 0.0
        %807 = vmatprep.subr.mxu0 0.0
        %808 = vmatpush1.msra.mxu0 0.0
        %809 = vmatprep.subr.mxu0 0.0
        %810 = vmatpush1.msra.mxu0 0.0
        %811 = vmatprep.subr.mxu0 0.0
        %812 = vmatpush1.msra.mxu0 0.0
        %813 = vmatprep.subr.mxu0 0.0
        %814 = vmatpush1.msra.mxu0 0.0
        %815 = vmatprep.subr.mxu0 0.0
        %816 = vmatpush1.msra.mxu0 0.0
        %817 = vmatprep.subr.mxu0 0.0
        %818 = vmatpush1.msra.mxu0 0.0
        %819 = vmatprep.subr.mxu0 0.0
        %820 = vmatpush1.msra.mxu0 0.0
        %821 = vmatprep.subr.mxu0 0.0
        %822 = vmatpush1.msra.mxu0 0.0
        %823 = vmatprep.subr.mxu0 0.0
        %824 = vmatpush1.msra.mxu0 0.0
        %825 = vmatprep.subr.mxu0 0.0
        %826 = vmatpush1.msra.mxu0 0.0
        %827 = vmatprep.subr.mxu0 0.0
        %828 = vmatpush1.msra.mxu0 0.0
        %829 = vmatprep.subr.mxu0 0.0
        %830 = vmatpush1.msra.mxu0 0.0
        %831 = vmatprep.subr.mxu0 0.0
        %832 = vmatpush1.msra.mxu0 0.0
        %833 = vmatprep.subr.mxu0 0.0
        %834 = vmatpush1.msra.mxu0 0.0
        %835 = vmatprep.subr.mxu0 0.0
        %836 = vmatpush1.msra.mxu0 0.0
        %837 = vmatprep.subr.mxu0 0.0
        %838 = vmatpush1.msra.mxu0 0.0
        %839 = vmatprep.subr.mxu0 0.0
        %840 = vmatpush1.msra.mxu0 0.0
        %841 = vmatprep.subr.mxu0 0.0
        %842 = vmatpush1.msra.mxu0 0.0
        %843 = vmatprep.mubr.f32.mxu0 0.0
        %844 = vmatmul.mubr.f32.gmra.mrb[0].mxu0 %v777
        %v845 = vpop.f32.mrb[0].mxu0
        %v846 = vadd.f32 %v774, %v845
        %v847 = vpop.f32.mrb[0].mxu0
        %848 = vdwg.mxu0
        %vm849 = vcmask 64512
        %v851 = vsel %vm849, %v678, 0
        %v854 = vsel %vm849, %v762, 0
        %856 = vmatprep.subr.mxu0 0.0
        %857 = vmatpush1.xpose.msra.mxu0 %v854
        %858 = vmatprep.subr.mxu0 0.0
        %859 = vmatpush1.xpose.msra.mxu0 0.0
        %860 = vmatprep.subr.mxu0 0.0
        %861 = vmatpush1.xpose.msra.mxu0 0.0
        %862 = vmatprep.subr.mxu0 0.0
        %863 = vmatpush1.xpose.msra.mxu0 0.0
        %864 = vmatprep.subr.mxu0 0.0
        %865 = vmatpush1.xpose.msra.mxu0 0.0
        %866 = vmatprep.subr.mxu0 0.0
        %867 = vmatpush1.xpose.msra.mxu0 0.0
        %868 = vmatprep.subr.mxu0 0.0
        %869 = vmatpush1.xpose.msra.mxu0 0.0
        %870 = vmatprep.subr.mxu0 0.0
        %871 = vmatpush1.xpose.msra.mxu0 0.0
        %872 = vmatprep.subr.mxu0 0.0
        %873 = vmatpush1.xpose.msra.mxu0 0.0
        %874 = vmatprep.subr.mxu0 0.0
        %875 = vmatpush1.xpose.msra.mxu0 0.0
        %876 = vmatprep.subr.mxu0 0.0
        %877 = vmatpush1.xpose.msra.mxu0 0.0
        %878 = vmatprep.subr.mxu0 0.0
        %879 = vmatpush1.xpose.msra.mxu0 0.0
        %880 = vmatprep.subr.mxu0 0.0
        %881 = vmatpush1.xpose.msra.mxu0 0.0
        %882 = vmatprep.subr.mxu0 0.0
        %883 = vmatpush1.xpose.msra.mxu0 0.0
        %884 = vmatprep.subr.mxu0 0.0
        %885 = vmatpush1.xpose.msra.mxu0 0.0
        %886 = vmatprep.subr.mxu0 0.0
        %887 = vmatpush1.xpose.msra.mxu0 0.0
        %888 = vmatprep.subr.mxu0 0.0
        %889 = vmatpush1.xpose.msra.mxu0 0.0
        %890 = vmatprep.subr.mxu0 0.0
        %891 = vmatpush1.xpose.msra.mxu0 0.0
        %892 = vmatprep.subr.mxu0 0.0
        %893 = vmatpush1.xpose.msra.mxu0 0.0
        %894 = vmatprep.subr.mxu0 0.0
        %895 = vmatpush1.xpose.msra.mxu0 0.0
        %896 = vmatprep.subr.mxu0 0.0
        %897 = vmatpush1.xpose.msra.mxu0 0.0
        %898 = vmatprep.subr.mxu0 0.0
        %899 = vmatpush1.xpose.msra.mxu0 0.0
        %900 = vmatprep.subr.mxu0 0.0
        %901 = vmatpush1.xpose.msra.mxu0 0.0
        %902 = vmatprep.subr.mxu0 0.0
        %903 = vmatpush1.xpose.msra.mxu0 0.0
        %904 = vmatprep.subr.mxu0 0.0
        %905 = vmatpush1.xpose.msra.mxu0 0.0
        %906 = vmatprep.subr.mxu0 0.0
        %907 = vmatpush1.xpose.msra.mxu0 0.0
        %908 = vmatprep.subr.mxu0 0.0
        %909 = vmatpush1.xpose.msra.mxu0 0.0
        %910 = vmatprep.subr.mxu0 0.0
        %911 = vmatpush1.xpose.msra.mxu0 0.0
        %912 = vmatprep.subr.mxu0 0.0
        %913 = vmatpush1.xpose.msra.mxu0 0.0
        %914 = vmatprep.subr.mxu0 0.0
        %915 = vmatpush1.xpose.msra.mxu0 0.0
        %916 = vmatprep.subr.mxu0 0.0
        %917 = vmatpush1.xpose.msra.mxu0 0.0
        %918 = vmatprep.subr.mxu0 0.0
        %919 = vmatpush1.xpose.msra.mxu0 0.0
        %920 = vmatprep.mubr.f32.mxu0 0.0
        %921 = vmatmul.mubr.f32.gmra.mrb[0].mxu0 %v851
        %v922 = vpop.f32.mrb[0].mxu0
        %v923 = vadd.f32 0.0, %v922
        %v924 = vpop.f32.mrb[0].mxu0
        %925 = vdwg.mxu0
        %v926 = vsel %vm849, %v923, -inf
        %927 = vmax.xlane.f32.xlu0 %v926
        %v928 = vpop.xlane.xlu0 %927
        %v929 = vsub.f32 %v923, %v928
        %v930 = vmul.f32 %v929, 1.442695
        %v931 = vpow.pop %v930
        %v932 = vsel %vm849, %v931, 0.0
        %933 = vadd.xlane.f32.xlu0 %v932
        %v934 = vpop.xlane.xlu0 %933
        %v935 = vrcp.pop %v934
        %v936 = vmul.f32 %v931, %v935
        %937 = vst.msk [vmem:[%s546] sm:$0xff] %vm849, %v936
        %v939 = vsel %vm849, %v936, 0
        %941 = vmatprep.subr.mxu0 0.0
        %942 = vmatpush1.msra.mxu0 %v846
        %943 = vmatprep.subr.mxu0 0.0
        %944 = vmatpush1.msra.mxu0 0.0
        %945 = vmatprep.subr.mxu0 0.0
        %946 = vmatpush1.msra.mxu0 0.0
        %947 = vmatprep.subr.mxu0 0.0
        %948 = vmatpush1.msra.mxu0 0.0
        %949 = vmatprep.subr.mxu0 0.0
        %950 = vmatpush1.msra.mxu0 0.0
        %951 = vmatprep.subr.mxu0 0.0
        %952 = vmatpush1.msra.mxu0 0.0
        %953 = vmatprep.subr.mxu0 0.0
        %954 = vmatpush1.msra.mxu0 0.0
        %955 = vmatprep.subr.mxu0 0.0
        %956 = vmatpush1.msra.mxu0 0.0
        %957 = vmatprep.subr.mxu0 0.0
        %958 = vmatpush1.msra.mxu0 0.0
        %959 = vmatprep.subr.mxu0 0.0
        %960 = vmatpush1.msra.mxu0 0.0
        %961 = vmatprep.subr.mxu0 0.0
        %962 = vmatpush1.msra.mxu0 0.0
        %963 = vmatprep.subr.mxu0 0.0
        %964 = vmatpush1.msra.mxu0 0.0
        %965 = vmatprep.subr.mxu0 0.0
        %966 = vmatpush1.msra.mxu0 0.0
        %967 = vmatprep.subr.mxu0 0.0
        %968 = vmatpush1.msra.mxu0 0.0
        %969 = vmatprep.subr.mxu0 0.0
        %970 = vmatpush1.msra.mxu0 0.0
        %971 = vmatprep.subr.mxu0 0.0
        %972 = vmatpush1.msra.mxu0 0.0
        %973 = vmatprep.subr.mxu0 0.0
        %974 = vmatpush1.msra.mxu0 0.0
        %975 = vmatprep.subr.mxu0 0.0
        %976 = vmatpush1.msra.mxu0 0.0
        %977 = vmatprep.subr.mxu0 0.0
        %978 = vmatpush1.msra.mxu0 0.0
        %979 = vmatprep.subr.mxu0 0.0
        %980 = vmatpush1.msra.mxu0 0.0
        %981 = vmatprep.subr.mxu0 0.0
        %982 = vmatpush1.msra.mxu0 0.0
        %983 = vmatprep.subr.mxu0 0.0
        %984 = vmatpush1.msra.mxu0 0.0
        %985 = vmatprep.subr.mxu0 0.0
        %986 = vmatpush1.msra.mxu0 0.0
        %987 = vmatprep.subr.mxu0 0.0
        %988 = vmatpush1.msra.mxu0 0.0
        %989 = vmatprep.subr.mxu0 0.0
        %990 = vmatpush1.msra.mxu0 0.0
        %991 = vmatprep.subr.mxu0 0.0
        %992 = vmatpush1.msra.mxu0 0.0
        %993 = vmatprep.subr.mxu0 0.0
        %994 = vmatpush1.msra.mxu0 0.0
        %995 = vmatprep.subr.mxu0 0.0
        %996 = vmatpush1.msra.mxu0 0.0
        %997 = vmatprep.subr.mxu0 0.0
        %998 = vmatpush1.msra.mxu0 0.0
        %999 = vmatprep.subr.mxu0 0.0
        %1000 = vmatpush1.msra.mxu0 0.0
        %1001 = vmatprep.subr.mxu0 0.0
        %1002 = vmatpush1.msra.mxu0 0.0
        %1003 = vmatprep.subr.mxu0 0.0
        %1004 = vmatpush1.msra.mxu0 0.0
        %1005 = vmatprep.mubr.f32.mxu0 0.0
        %1006 = vmatmul.mubr.f32.gmra.mrb[0].mxu0 %v939
        %v1007 = vpop.f32.mrb[0].mxu0
        %v1008 = vadd.f32 0.0, %v1007
        %v1009 = vpop.f32.mrb[0].mxu0
        %1010 = vdwg.mxu0
        %v1011 = vld [vmem:[#allocation2] sm:$0xff]
        %v1012 = vld [vmem:[%s586] sm:$0xff]
        %v1014 = vsel %vm849, %v1008, 0
        %1016 = vmatprep.subr.mxu0 0.0
        %1017 = vmatpush1.msra.mxu0 %v1012
        %1018 = vmatprep.subr.mxu0 0.0
        %1019 = vmatpush1.msra.mxu0 0.0
        %1020 = vmatprep.subr.mxu0 0.0
        %1021 = vmatpush1.msra.mxu0 0.0
        %1022 = vmatprep.subr.mxu0 0.0
        %1023 = vmatpush1.msra.mxu0 0.0
        %1024 = vmatprep.subr.mxu0 0.0
        %1025 = vmatpush1.msra.mxu0 0.0
        %1026 = vmatprep.subr.mxu0 0.0
        %1027 = vmatpush1.msra.mxu0 0.0
        %1028 = vmatprep.subr.mxu0 0.0
        %1029 = vmatpush1.msra.mxu0 0.0
        %1030 = vmatprep.subr.mxu0 0.0
        %1031 = vmatpush1.msra.mxu0 0.0
        %1032 = vmatprep.subr.mxu0 0.0
        %1033 = vmatpush1.msra.mxu0 0.0
        %1034 = vmatprep.subr.mxu0 0.0
        %1035 = vmatpush1.msra.mxu0 0.0
        %1036 = vmatprep.subr.mxu0 0.0
        %1037 = vmatpush1.msra.mxu0 0.0
        %1038 = vmatprep.subr.mxu0 0.0
        %1039 = vmatpush1.msra.mxu0 0.0
        %1040 = vmatprep.subr.mxu0 0.0
        %1041 = vmatpush1.msra.mxu0 0.0
        %1042 = vmatprep.subr.mxu0 0.0
        %1043 = vmatpush1.msra.mxu0 0.0
        %1044 = vmatprep.subr.mxu0 0.0
        %1045 = vmatpush1.msra.mxu0 0.0
        %1046 = vmatprep.subr.mxu0 0.0
        %1047 = vmatpush1.msra.mxu0 0.0
        %1048 = vmatprep.subr.mxu0 0.0
        %1049 = vmatpush1.msra.mxu0 0.0
        %1050 = vmatprep.subr.mxu0 0.0
        %1051 = vmatpush1.msra.mxu0 0.0
        %1052 = vmatprep.subr.mxu0 0.0
        %1053 = vmatpush1.msra.mxu0 0.0
        %1054 = vmatprep.subr.mxu0 0.0
        %1055 = vmatpush1.msra.mxu0 0.0
        %1056 = vmatprep.subr.mxu0 0.0
        %1057 = vmatpush1.msra.mxu0 0.0
        %1058 = vmatprep.subr.mxu0 0.0
        %1059 = vmatpush1.msra.mxu0 0.0
        %1060 = vmatprep.subr.mxu0 0.0
        %1061 = vmatpush1.msra.mxu0 0.0
        %1062 = vmatprep.subr.mxu0 0.0
        %1063 = vmatpush1.msra.mxu0 0.0
        %1064 = vmatprep.subr.mxu0 0.0
        %1065 = vmatpush1.msra.mxu0 0.0
        %1066 = vmatprep.subr.mxu0 0.0
        %1067 = vmatpush1.msra.mxu0 0.0
        %1068 = vmatprep.subr.mxu0 0.0
        %1069 = vmatpush1.msra.mxu0 0.0
        %1070 = vmatprep.subr.mxu0 0.0
        %1071 = vmatpush1.msra.mxu0 0.0
        %1072 = vmatprep.subr.mxu0 0.0
        %1073 = vmatpush1.msra.mxu0 0.0
        %1074 = vmatprep.subr.mxu0 0.0
        %1075 = vmatpush1.msra.mxu0 0.0
        %1076 = vmatprep.subr.mxu0 0.0
        %1077 = vmatpush1.msra.mxu0 0.0
        %1078 = vmatprep.subr.mxu0 0.0
        %1079 = vmatpush1.msra.mxu0 0.0
        %1080 = vmatprep.mubr.f32.mxu0 0.0
        %1081 = vmatmul.mubr.f32.gmra.mrb[0].mxu0 %v1014
        %v1082 = vpop.f32.mrb[0].mxu0
        %v1083 = vadd.f32 0.0, %v1082
        %v1084 = vpop.f32.mrb[0].mxu0
        %1085 = vdwg.mxu0
        %v1086 = vadd.f32 %v1011, %v1083
        %1087 = vst.msk [vmem:[#allocation2] sm:$0xff] %vm607, %v1086
        %p1088 = scmp.eq.s32.totalorder %s35, 3
        // Predicated region
        $region69: #{tpu_custom_call.1} parent=63 // pred_check
          %p1089 = pneg %p1088
        $region70: #{tpu_custom_call.1} parent=63 // pred_check_branch
          %1091 = sbr.rel (%p1089) target = $region72
        $region71: #{tpu_custom_call.1} parent=63 // pred_region
          %v1092 = vld [vmem:[#allocation2] sm:$0xff]
          %v1093 = vld [vmem:[%s10] sm:$0x1]
          %v1095 = vlaneseq
          %v1096 = vshrl.u32 %v1095, 7
          %v1097 = vsub.s32 0, %v1096
          %v1098 = vrot.slane %v1093, %v1097
          %v1100 = vadd.f32 %v1092, %v1098
          %1101 = vst.msk [vmem:[%s539] sm:$0xff] %vm607, %v1100
        $region72: #{tpu_custom_call.1} parent=63 // pred_fallthru
          _
        %s1102 = sand.u32 %s331, 1
        %s1103 = scalar_lea.sflag [#allocation4], %s1102
        %s1104 = sand.u32 %s331, 1
        %s1105 = smul.addr %s1104, 8
        %s1106 = scalar_lea.vmem [#allocation3], %s1105
        %s1107 = sand.u32 %s359, 1
        %s1108 = scalar_lea.sflag [#allocation6], %s1107
        %s1109 = sand.u32 %s359, 1
        %s1110 = smul.addr %s1109, 8
        %s1111 = scalar_lea.vmem [#allocation5], %s1110
        // Predicated region
        $region73: #{tpu_custom_call.1} parent=63 // pred_check
          %p1112 = pneg %p341
        $region74: #{tpu_custom_call.1} parent=63 // pred_check_branch
          %1114 = sbr.rel (%p1112) target = $region76
        $region75: #{tpu_custom_call.1} parent=63 // pred_region
          %s1116 = ssub.s32 128, 128
          %1117 = vsyncadd %s1103, %s1116
          %s1118 = smul.addr %s34, 128
          %s1119 = scalar_lea.hbm %s11, %s1118
          %s1121 = sshll.u32 %s1106, 4
          %s1122 = int_to_ptr.vmem [resolvable:$true] %s1121
          %1124 = dma.vmem_to_hbm [thread:$0]  %s1122, 128, %s1119, %s1103
        $region76: #{tpu_custom_call.1} parent=63 // pred_fallthru
          _
        // Predicated region
        $region77: #{tpu_custom_call.1} parent=63 // pred_check
          %p1125 = pneg %p369
        $region78: #{tpu_custom_call.1} parent=63 // pred_check_branch
          %1127 = sbr.rel (%p1125) target = $region80
        $region79: #{tpu_custom_call.1} parent=63 // pred_region
          %s1129 = ssub.s32 128, 128
          %1130 = vsyncadd %s1108, %s1129
          %s1131 = smul.addr %s34, 4
          %s1132 = sadd.s32 %s35, %s1131
          %s1133 = smul.addr %s1132, 128
          %s1134 = scalar_lea.hbm %s12, %s1133
          %s1136 = sshll.u32 %s1111, 4
          %s1137 = int_to_ptr.vmem [resolvable:$true] %s1136
          %1139 = dma.vmem_to_hbm [thread:$0]  %s1137, 128, %s1134, %s1108
        $region80: #{tpu_custom_call.1} parent=63 // pred_fallthru
          _
      $region64: #{tpu_custom_call.1} parent=5 // pred_fallthru
        _
      %p1140 = scmp.le.s32.totalorder 2, %s25
      // Predicated region
      $region81: #{tpu_custom_call.1} parent=5 // pred_check
        %p1141 = pneg %p1140
      $region82: #{tpu_custom_call.1} parent=5 // pred_check_branch
        %1143 = sbr.rel (%p1141) target = $region84
      $region83: #{tpu_custom_call.1} parent=5 // pred_region
        %s1144 = ssub.s32 %s25, 2
        // Predicated region
        $region85: #{tpu_custom_call.1} parent=83 // pred_check
          %p1145 = pneg %p347
        $region86: #{tpu_custom_call.1} parent=83 // pred_check_branch
          %1147 = sbr.rel (%p1145) target = $region88
        $region87: #{tpu_custom_call.1} parent=83 // pred_region
          %s1148 = sand.u32 %s332, 1
          %s1149 = scalar_lea.sflag [#allocation4], %s1148
          %s1150 = sand.u32 %s332, 1
          %s1151 = smul.addr %s1150, 8
          %s1152 = scalar_lea.vmem [#allocation3], %s1151
          %1153 = dma.done %s1149, 128
        $region88: #{tpu_custom_call.1} parent=83 // pred_fallthru
          _
        // Predicated region
        $region89: #{tpu_custom_call.1} parent=83 // pred_check
          %p1154 = pneg %p375
        $region90: #{tpu_custom_call.1} parent=83 // pred_check_branch
          %1156 = sbr.rel (%p1154) target = $region92
        $region91: #{tpu_custom_call.1} parent=83 // pred_region
          %s1157 = sand.u32 %s360, 1
          %s1158 = scalar_lea.sflag [#allocation6], %s1157
          %s1159 = sand.u32 %s360, 1
          %s1160 = smul.addr %s1159, 8
          %s1161 = scalar_lea.vmem [#allocation5], %s1160
          %1162 = dma.done %s1158, 128
        $region92: #{tpu_custom_call.1} parent=83 // pred_fallthru
          _
      $region84: #{tpu_custom_call.1} parent=5 // pred_fallthru
        _
    $region6: #{tpu_custom_call.1} parent=1 // loop_footer
      %s29 = sadd.s32 1, %s25
    $region7: #{tpu_custom_call.1} parent=1 // loop_footer_branch
      %24 = sbr.rel target = $region3
    $region8: #{tpu_custom_call.1} parent=1 // loop_exit
      _
    %1163 = vsyncpa [#allocation4], 1
    %s1164 = scalar_lea.sflag [#allocation4], 1
    %1165 = vsyncpa %s1164, 1
    %1166 = vsyncpa [#allocation6], 1
    %s1167 = scalar_lea.sflag [#allocation6], 1
    %1168 = vsyncpa %s1167, 1

</llo_original>
